<compile_context>
chip_gen: v7x
topology: tpu7x:2x2x1
jax: 0.10.0
libtpu: 0.0.40
codegen_flags: <defaults>
</compile_context>

<pallas_src>
import functools
import math

import jax
import jax.numpy as jnp
from jax.experimental import pallas as pl
from jax.experimental.pallas import tpu as pltpu


def _round_up(v, mult):
    return ((v + mult - 1) // mult) * mult


def _mbstd_stats_kernel(x_ref, o_ref, acc_ref, *, eps, inv_f, pad_corr):
    """Per-(M, nc) minibatch-std statistics.

    x_ref:   [ng, tm, nc, TR, 128] input tile (lane-dense feature slab)
    o_ref:   [tm, nc, 128]         per-subgroup mean std, broadcast over lanes
    acc_ref: [tm, nc, 8, 128]      f32 lane/sublane-wide partial-sum accumulator
    """
    f = pl.program_id(1)

    @pl.when(f == 0)
    def _():
        acc_ref[...] = jnp.zeros_like(acc_ref)

    xb = x_ref[...].astype(jnp.float32)            # [ng, tm, nc, TR, 128]
    mu = jnp.mean(xb, axis=0, keepdims=True)       # mean over group dim
    var = jnp.mean((xb - mu) ** 2, axis=0)         # [tm, nc, TR, 128]
    std = jnp.sqrt(var + eps)

    tm, nc, tr, lanes = std.shape
    # Elementwise (VPU) partial reduction down to an (8, 128) slab; defer the
    # cross-lane/sublane reduce to the final grid step (one XLU reduce total).
    partial = std.reshape(tm, nc, tr // 8, 8, lanes).sum(axis=2)
    acc_ref[...] += partial

    @pl.when(f == pl.num_programs(1) - 1)
    def _():
        total = jnp.sum(acc_ref[...], axis=(-2, -1))          # [tm, nc]
        mean = (total - pad_corr) * inv_f
        o_ref[...] = jnp.broadcast_to(mean[:, :, None], o_ref.shape).astype(
            o_ref.dtype
        )


def minibatch_std_layer(x, group_size=4, new_channels=1, epsilon=1e-8):
    """Pallas implementation of MiniBatchSTDLayer.forward (NCHW input)."""
    if group_size <= 1:
        return x
    n, c, h, w = x.shape
    ng = min(group_size, n)
    nc = new_channels
    m = n // ng
    temp_c = c // nc
    feat = temp_c * h * w

    # Shard M over two blocks when possible so v7x can use both TensorCores
    # ("parallel" axis); harmless loop split on single-core v5e/v6e.
    tm = m // 2 if (m >= 2 and m % 2 == 0) else m

    itemsize = jnp.dtype(x.dtype).itemsize
    rows_raw = pl.cdiv(feat, 128)

    # Largest lane-dense (TR, 128) feature slab keeping the (double-buffered)
    # input block inside a conservative VMEM budget (safe on v5e/v6e/v7x).
    block_budget = 2 * 1024 * 1024
    row_bytes = ng * tm * nc * 128 * itemsize
    tr = (block_budget // row_bytes) // 8 * 8
    tr = max(8, min(tr, 512))
    tr = min(tr, _round_up(rows_raw, 8))
    rows_padded = _round_up(rows_raw, tr)

    # Each zero-padded feature position contributes exactly sqrt(epsilon) to
    # the per-(m, nc) sum (zero variance across the group); subtract exactly.
    pad_count = rows_padded * 128 - feat
    pad_corr = float(pad_count) * math.sqrt(epsilon)

    xg = x.reshape(ng, m, nc, feat)
    if pad_count:
        xg = jnp.pad(xg, ((0, 0), (0, 0), (0, 0), (0, pad_count)))
    xg = xg.reshape(ng, m, nc, rows_padded, 128)

    grid = (m // tm, rows_padded // tr)

    in_block_bytes = ng * tm * nc * tr * 128 * itemsize
    out_block_bytes = tm * nc * 128 * 4
    acc_bytes = tm * nc * 8 * 128 * 4
    vmem_limit = int(
        6 * in_block_bytes + 2 * out_block_bytes + acc_bytes + (2 << 20)
    )
    vmem_limit = max(vmem_limit, 16 << 20)
    vmem_limit = min(vmem_limit, 48 << 20)  # stay well inside v7x's 64 MiB

    kernel = functools.partial(
        _mbstd_stats_kernel,
        eps=float(epsilon),
        inv_f=float(1.0 / feat),
        pad_corr=pad_corr,
    )

    stats = pl.pallas_call(
        kernel,
        out_shape=jax.ShapeDtypeStruct((m, nc, 128), jnp.float32),
        grid_spec=pltpu.PrefetchScalarGridSpec(
            num_scalar_prefetch=0,
            grid=grid,
            in_specs=[
                pl.BlockSpec((ng, tm, nc, tr, 128), lambda b, f: (0, b, 0, f, 0))
            ],
            out_specs=pl.BlockSpec((tm, nc, 128), lambda b, f: (b, 0, 0)),
            scratch_shapes=[pltpu.VMEM((tm, nc, 8, 128), jnp.float32)],
        ),
        compiler_params=pltpu.CompilerParams(
            dimension_semantics=("parallel", "arbitrary"),
            vmem_limit_bytes=vmem_limit,
        ),
    )(xg)

    # TODO(synk): fuse the passthrough + concat into the kernel (write one
    # [N, C+nc, H, W] output buffer) so x is streamed from HBM only once.
    s = stats[:, :, 0]                                         # [m, nc]
    y = jnp.broadcast_to(s[None, :, :, None, None], (ng, m, nc, h, w))
    y = y.reshape(ng * m, nc, h, w).astype(x.dtype)
    return jnp.concatenate([x, y], axis=1)


def minibatch_std_ref(x, group_size=4, new_channels=1, epsilon=1e-8):
    """Pure-JAX reference mirroring the PyTorch forward exactly."""
    if group_size <= 1:
        return x
    n, c, h, w = x.shape
    ng = min(group_size, n)
    nc = new_channels
    temp_c = c // nc
    y = x.reshape(ng, -1, nc, temp_c, h, w)
    y = y - jnp.mean(y, axis=0, keepdims=True)
    y = jnp.mean(y ** 2, axis=0)
    y = jnp.sqrt(y + epsilon)
    y = jnp.mean(y, axis=(2, 3, 4), keepdims=True)
    y = jnp.mean(y, axis=2)
    y = jnp.tile(y, (ng, 1, h, w))
    return jnp.concatenate([x, y], axis=1)


if __name__ == "__main__":
    key = jax.random.PRNGKey(0)
    x = jax.random.normal(key, (2, 4, 16, 16), dtype=jnp.float32)

    out = minibatch_std_layer(x, group_size=4, new_channels=1, epsilon=1e-8)
    out = jax.block_until_ready(out)

    ref = minibatch_std_ref(x, group_size=4, new_channels=1, epsilon=1e-8)

    assert out.shape == (2, 5, 16, 16), out.shape
    assert out.dtype == x.dtype
    assert jnp.allclose(out, ref, atol=1e-5, rtol=1e-5), "mismatch vs reference"

    print("KERNEL_OK")
</pallas_src>

<mosaic_0001>
module attributes {stable_mosaic.version = 11 : i64} {
  func.func @_mbstd_stats_kernel(%arg0: i32, %arg1: i32, %arg2: memref<2x1x1x8x128xf32, #tpu.memory_space<vmem>>, %arg3: memref<1x1x128xf32, #tpu.memory_space<vmem>>, %arg4: memref<1x1x8x128xf32, #tpu.memory_space<vmem>>) attributes {dimension_semantics = [#tpu.dimension_semantics<parallel>, #tpu.dimension_semantics<arbitrary>], iteration_bounds = array<i64: 1, 1>, scalar_prefetch = 0 : i64, scratch_operands = 1 : i64, tpu.core_type = #tpu.core_type<tc>, window_params = [{transform_indices = @transform_0, window_bounds = array<i64: 2, 1, 1, 8, 128>}, {transform_indices = @transform_1, window_bounds = array<i64: 1, 1, 128>}]} {
    %c0_i32 = arith.constant 0 : i32
    %0 = arith.cmpi eq, %arg1, %c0_i32 : i32
    %1 = arith.extui %0 : i1 to i32
    %c0_i32_0 = arith.constant 0 : i32
    %2 = arith.cmpi ne, %1, %c0_i32_0 : i32
    scf.if %2 {
      %cst_20 = arith.constant 0.000000e+00 : f32
      %25 = vector.broadcast %cst_20 : f32 to vector<1x1x8x128xf32>
      %c0_21 = arith.constant 0 : index
      %c0_22 = arith.constant 0 : index
      %c0_23 = arith.constant 0 : index
      %c0_24 = arith.constant 0 : index
      %26 = vector.load %arg4[%c0_21, %c0_22, %c0_23, %c0_24] : memref<1x1x8x128xf32, #tpu.memory_space<vmem>>, vector<1x1x8x128xf32>
      tpu.vector_store %arg4[%c0_21, %c0_22, %c0_23, %c0_24], %25 {strides = array<i32>} : memref<1x1x8x128xf32, #tpu.memory_space<vmem>>, vector<1x1x8x128xf32>,
    } else {
    }
    %c0 = arith.constant 0 : index
    %c0_1 = arith.constant 0 : index
    %c0_2 = arith.constant 0 : index
    %c0_3 = arith.constant 0 : index
    %c0_4 = arith.constant 0 : index
    %3 = vector.load %arg2[%c0, %c0_1, %c0_2, %c0_3, %c0_4] : memref<2x1x1x8x128xf32, #tpu.memory_space<vmem>>, vector<2x1x1x8x128xf32>
    %cst = arith.constant dense<0.000000e+00> : vector<1x1x8x128xf32>
    %4 = vector.multi_reduction <add>, %3, %cst [0] : vector<2x1x1x8x128xf32> to vector<1x1x8x128xf32>
    %5 = vector.shape_cast %4 : vector<1x1x8x128xf32> to vector<1x1x1x8x128xf32>
    %cst_5 = arith.constant 2.000000e+00 : f32
    %6 = vector.broadcast %cst_5 : f32 to vector<1x1x1x8x128xf32>
    %7 = arith.divf %5, %6 : vector<1x1x1x8x128xf32>
    %8 = vector.broadcast %7 : vector<1x1x1x8x128xf32> to vector<2x1x1x8x128xf32>
    %9 = arith.subf %3, %8 : vector<2x1x1x8x128xf32>
    %10 = arith.mulf %9, %9 : vector<2x1x1x8x128xf32>
    %cst_6 = arith.constant dense<0.000000e+00> : vector<1x1x8x128xf32>
    %11 = vector.multi_reduction <add>, %10, %cst_6 [0] : vector<2x1x1x8x128xf32> to vector<1x1x8x128xf32>
    %cst_7 = arith.constant 2.000000e+00 : f32
    %12 = vector.broadcast %cst_7 : f32 to vector<1x1x8x128xf32>
    %13 = arith.divf %11, %12 : vector<1x1x8x128xf32>
    %cst_8 = arith.constant 9.99999993E-9 : f32
    %14 = vector.broadcast %cst_8 : f32 to vector<1x1x8x128xf32>
    %15 = arith.addf %13, %14 : vector<1x1x8x128xf32>
    %16 = math.sqrt %15 : vector<1x1x8x128xf32>
    %17 = vector.shape_cast %16 : vector<1x1x8x128xf32> to vector<1x1x1x8x128xf32>
    %cst_9 = arith.constant dense<0.000000e+00> : vector<1x1x8x128xf32>
    %18 = vector.multi_reduction <add>, %17, %cst_9 [2] : vector<1x1x1x8x128xf32> to vector<1x1x8x128xf32>
    %c0_10 = arith.constant 0 : index
    %c0_11 = arith.constant 0 : index
    %c0_12 = arith.constant 0 : index
    %c0_13 = arith.constant 0 : index
    %19 = vector.load %arg4[%c0_10, %c0_11, %c0_12, %c0_13] : memref<1x1x8x128xf32, #tpu.memory_space<vmem>>, vector<1x1x8x128xf32>
    %20 = arith.addf %19, %18 : vector<1x1x8x128xf32>
    %c0_14 = arith.constant 0 : index
    %c0_15 = arith.constant 0 : index
    %c0_16 = arith.constant 0 : index
    %c0_17 = arith.constant 0 : index
    %21 = vector.load %arg4[%c0_14, %c0_15, %c0_16, %c0_17] : memref<1x1x8x128xf32, #tpu.memory_space<vmem>>, vector<1x1x8x128xf32>
    tpu.vector_store %arg4[%c0_14, %c0_15, %c0_16, %c0_17], %20 {strides = array<i32>} : memref<1x1x8x128xf32, #tpu.memory_space<vmem>>, vector<1x1x8x128xf32>,
    %c0_i32_18 = arith.constant 0 : i32
    %22 = arith.cmpi eq, %arg1, %c0_i32_18 : i32
    %23 = arith.extui %22 : i1 to i32
    %c0_i32_19 = arith.constant 0 : i32
    %24 = arith.cmpi ne, %23, %c0_i32_19 : i32
    scf.if %24 {
      %c0_20 = arith.constant 0 : index
      %c0_21 = arith.constant 0 : index
      %c0_22 = arith.constant 0 : index
      %c0_23 = arith.constant 0 : index
      %25 = vector.load %arg4[%c0_20, %c0_21, %c0_22, %c0_23] : memref<1x1x8x128xf32, #tpu.memory_space<vmem>>, vector<1x1x8x128xf32>
      %cst_24 = arith.constant dense<0.000000e+00> : vector<1x1xf32>
      %26 = vector.multi_reduction <add>, %25, %cst_24 [2, 3] : vector<1x1x8x128xf32> to vector<1x1xf32>
      %cst_25 = arith.constant 0.000000e+00 : f32
      %27 = vector.broadcast %cst_25 : f32 to vector<1x1xf32>
      %28 = arith.subf %26, %27 : vector<1x1xf32>
      %cst_26 = arith.constant 9.765625E-4 : f32
      %29 = vector.broadcast %cst_26 : f32 to vector<1x1xf32>
      %30 = arith.mulf %28, %29 : vector<1x1xf32>
      %31 = vector.shape_cast %30 : vector<1x1xf32> to vector<1x1x1xf32>
      %32 = vector.shape_cast %31 : vector<1x1x1xf32> to vector<1x1x1xf32>
      %33 = vector.broadcast %32 : vector<1x1x1xf32> to vector<1x1x128xf32>
      %c0_27 = arith.constant 0 : index
      %c0_28 = arith.constant 0 : index
      %c0_29 = arith.constant 0 : index
      %34 = vector.load %arg3[%c0_27, %c0_28, %c0_29] : memref<1x1x128xf32, #tpu.memory_space<vmem>>, vector<1x1x128xf32>
      tpu.vector_store %arg3[%c0_27, %c0_28, %c0_29], %33 {strides = array<i32>} : memref<1x1x128xf32, #tpu.memory_space<vmem>>, vector<1x1x128xf32>,
    } else {
    }
    return
  }
  func.func @transform_0(%arg0: i32, %arg1: i32) -> (i32, i32, i32, i32, i32) {
    %c0_i32 = arith.constant 0 : i32
    %c0_i32_0 = arith.constant 0 : i32
    %c0_i32_1 = arith.constant 0 : i32
    %c0_i32_2 = arith.constant 0 : i32
    return %c0_i32, %arg0, %c0_i32_0, %arg1, %c0_i32_1 : i32, i32, i32, i32, i32
  }
  func.func @transform_1(%arg0: i32, %arg1: i32) -> (i32, i32, i32) {
    %c0_i32 = arith.constant 0 : i32
    %c0_i32_0 = arith.constant 0 : i32
    %c0_i32_1 = arith.constant 0 : i32
    return %arg0, %c0_i32, %c0_i32_0 : i32, i32, i32
  }
}

</mosaic_0001>

<llo_original>
// kernel: tpu_custom_call.1
$region0: #{tpu_custom_call.1}
  #allocation0 [shape = 'u32[]', space=smem, size = 0x4, offset = 0x4, fixed_abs, tag = 'smem constant byte address 0x4 - core index']
  #allocation1 [shape = 'u32[144,128]{1,0:T(1,128)}', space=vmem, size = 0x12000, scoped, tag = 'internal scratch']
  #allocation2 [shape = 'f32[1,1,8,128]{3,2,1,0:T(8,128)}', space=vmem, size = 0x1000, scoped, tag = 'scratch operand']
  %s0 = inlined_call_operand.hbm [shape: f32[2,1,1,8,128], index: 0, kind: input, shape index: {}]
  %s1 = inlined_call_operand.hbm [shape: f32[1,1,128], index: 1, kind: output, shape index: {}]
  %s2 = sld [smem:[#allocation0]]
  $region26: #{tpu_custom_call.1} parent=0
    _
  %s4 = ssub.s32 1, %s2
  %s5 = scalar_select 0, %s4, %s2
  $region1: #{tpu_custom_call.1} parent=0
    #allocation3 [shape = 'u8[8192]{0}', space=vmem, size = 0x2000, scoped, tag = 'input window, operand 0, single buffered']
    #allocation4 [shape = 's32[1]{0}', space=sflag, size = 0x4, scoped, tag = 'scoped memory for tpu_custom_call.1']
    #allocation5 [shape = 's32[1]{0}', space=sflag, size = 0x4, scoped, tag = 'scoped memory for tpu_custom_call.1']
    #allocation6 [shape = 'u8[512]{0}', space=vmem, size = 0x400, scoped, tag = 'output window, operand 0, single buffered']
    %6 = vsyncpa [#allocation4], 0
    %7 = vsyncpa [#allocation5], 0
    // Predicated region
    $region2: #{tpu_custom_call.1} parent=1 // pred_check
      _
    $region3: #{tpu_custom_call.1} parent=1 // pred_check_branch
      %9 = sbr.rel (0) target = $region5
    $region4: #{tpu_custom_call.1} parent=1 // pred_region
      %s11 = ssub.s32 256, 256
      %12 = vsyncadd [#allocation4], %s11
      %s13 = sshll.u32 [#allocation3], 4
      %s14 = int_to_ptr.vmem [resolvable:$true] %s13
      %19 = dma.hbm_to_vmem [thread:$0]  %s0, 256, %s14, [#allocation4], 128, 128, 8
    $region5: #{tpu_custom_call.1} parent=1 // pred_fallthru
      _
    // Predicated region
    $region6: #{tpu_custom_call.1} parent=1 // pred_check
      _
    $region7: #{tpu_custom_call.1} parent=1 // pred_check_branch
      %21 = sbr.rel (0) target = $region9
    $region8: #{tpu_custom_call.1} parent=1 // pred_region
      %22 = dma.done [#allocation4], 256
    $region9: #{tpu_custom_call.1} parent=1 // pred_fallthru
      _
    %p23 = scmp.eq.s32.totalorder 0, 0
    // Predicated region
    $region10: #{tpu_custom_call.1} parent=1 // pred_check
      %p24 = pneg %p23
    $region11: #{tpu_custom_call.1} parent=1 // pred_check_branch
      %26 = sbr.rel (%p24) target = $region13
    $region12: #{tpu_custom_call.1} parent=1 // pred_region
      %27 = vst [vmem:[#allocation2] sm:$0xff] 0.0
    $region13: #{tpu_custom_call.1} parent=1 // pred_fallthru
      _
    %v28 = vld [vmem:[#allocation3] sm:$0xff]
    %v29 = vld [vmem:[#allocation3 + $0x8] sm:$0xff]
    %v30 = vadd.f32 %v28, %v29
    %v31 = vrcp.pop 2.0
    %v32 = vmul.f32 %v30, %v31
    %v33 = vsub.f32 %v28, %v32
    %v34 = vsub.f32 %v29, %v32
    %v35 = vmul.f32 %v33, %v33
    %v36 = vmul.f32 %v34, %v34
    %v37 = vadd.f32 %v35, %v36
    %v38 = vmul.f32 %v37, %v31
    %v39 = vadd.f32 %v38, 1e-08
    %v40 = vrsqrt.pop %v39
    %v41 = vmul.f32 %v39, %v40
    %vm42 = vcmp.eq.f32.partialorder %v39, inf
    %v43 = vsel %vm42, %v39, %v41
    %vm44 = vcmp.eq.f32.partialorder %v39, 0.0
    %v45 = vand.u32 %v39, 2147483648
    %v46 = vsel %vm44, %v45, %v43
    %v47 = vadd.f32 %v46, 0.0
    %v48 = vld [vmem:[#allocation2] sm:$0xff]
    %v49 = vadd.f32 %v48, %v47
    %50 = vst [vmem:[#allocation2] sm:$0xff] %v49
    // Predicated region
    $region14: #{tpu_custom_call.1} parent=1 // pred_check
      %p51 = pneg %p23
    $region15: #{tpu_custom_call.1} parent=1 // pred_check_branch
      %53 = sbr.rel (%p51) target = $region17
    $region16: #{tpu_custom_call.1} parent=1 // pred_region
      %v54 = vld [vmem:[#allocation2] sm:$0xff]
      %55 = vadd.xlane.f32.xlu0 %v54
      %v56 = vpop.xlane.xlu0 %55
      %v57 = vrot.slane %v56, 4
      %v58 = vadd.f32 %v56, %v57
      %v59 = vrot.slane %v58, 2
      %v60 = vadd.f32 %v58, %v59
      %v61 = vrot.slane %v60, 1
      %v62 = vadd.f32 %v60, %v61
      %v63 = vmul.f32 %v62, 0.0009765625
      %64 = vst [vmem:[#allocation6] sm:$0x1] %v63
    $region17: #{tpu_custom_call.1} parent=1 // pred_fallthru
      _
    // Predicated region
    $region18: #{tpu_custom_call.1} parent=1 // pred_check
      _
    $region19: #{tpu_custom_call.1} parent=1 // pred_check_branch
      %66 = sbr.rel (0) target = $region21
    $region20: #{tpu_custom_call.1} parent=1 // pred_region
      %s68 = ssub.s32 16, 16
      %69 = vsyncadd [#allocation5], %s68
      %s71 = sshll.u32 [#allocation6], 4
      %s72 = int_to_ptr.vmem [resolvable:$true] %s71
      %74 = dma.vmem_to_hbm [thread:$0]  %s72, 16, %s1, [#allocation5]
    $region21: #{tpu_custom_call.1} parent=1 // pred_fallthru
      _
    // Predicated region
    $region22: #{tpu_custom_call.1} parent=1 // pred_check
      _
    $region23: #{tpu_custom_call.1} parent=1 // pred_check_branch
      %76 = sbr.rel (0) target = $region25
    $region24: #{tpu_custom_call.1} parent=1 // pred_region
      %77 = dma.done [#allocation5], 16
    $region25: #{tpu_custom_call.1} parent=1 // pred_fallthru
      _
    %78 = vsyncpa [#allocation4], 1
    %79 = vsyncpa [#allocation5], 1

</llo_original>
